<compile_context>
chip_gen: v7x
topology: tpu7x:2x2x1
jax: 0.10.0
libtpu: 0.0.40
codegen_flags: <defaults>
</compile_context>

<pallas_src>
import functools

import jax
import jax.numpy as jnp
import numpy as np
from jax.experimental import pallas as pl
from jax.experimental.pallas import tpu as pltpu


# ---------------------------------------------------------------------------
# Kernels
# ---------------------------------------------------------------------------
def _unpatchify_kernel_lane_dense(x_ref, o_ref, *, p, n_w):
    # x_ref: (ct, n_h, n_w, p*p)  -- tokens of ct (batch, channel) planes
    # o_ref: (ct, n_h, p, n_w*p)  -- output with lane-dense last dim W = n_w*p
    # For in-patch row r: take the p-wide lane window of every token in the
    # block and merge the (n_w, p) slab into one W-wide image row, producing
    # unmasked full-width stores (vs. p/128-masked stores in the fallback).
    ct, n_h = x_ref.shape[0], x_ref.shape[1]
    for r in range(p):
        slab = x_ref[:, :, :, r * p:(r + 1) * p]            # (ct, n_h, n_w, p)
        o_ref[:, :, r, :] = slab.reshape(ct, n_h, n_w * p)   # one row-slab store


def _unpatchify_kernel_safe(x_ref, o_ref, *, p):
    # x_ref: (ct, n_h, n_w, p*p)
    # o_ref: (ct, n_h, p, n_w, p)
    # Layout-identical slab copies (source and destination both have tiled
    # dims (n_w, p)) -> no in-VMEM relayout, robust on every Mosaic version,
    # but stores are only p/128 lane-dense.  Used for small images (W < 128,
    # where full-width stores are impossible anyway) and as a fallback.
    for r in range(p):
        o_ref[:, :, r, :, :] = x_ref[:, :, :, r * p:(r + 1) * p]


# ---------------------------------------------------------------------------
# Sizing helpers
# ---------------------------------------------------------------------------
def _vmem_capacity_bytes():
    # Per-core VMEM: 128 MiB on v5e/v6e, 64 MiB on v7x.
    try:
        info = pltpu.get_tpu_info()
        cap = int(getattr(info, "vmem_capacity_bytes", 0))
        if cap > 0:
            return cap
    except Exception:
        pass
    return 64 * 1024 * 1024  # conservative default (v7x per-TensorCore VMEM)


def _largest_divisor_at_most(n, k):
    k = max(1, min(n, k))
    for d in range(k, 0, -1):
        if n % d == 0:
            return d
    return 1


def _pick_ct(bc, max_ct):
    ct = _largest_divisor_at_most(bc, max_ct)
    # Prefer an even number of grid steps (>= 2): the grid axis is
    # "parallel", and an even split keeps both v7x TensorCores busy for the
    # whole run (grid = 1 or an odd grid strands one core part of the time).
    if bc >= 2 and (bc // ct) % 2 != 0:
        for cand in range(ct, 0, -1):
            if bc % cand == 0 and (bc // cand) % 2 == 0:
                return cand
    return ct


def _padded_block_bytes(shape, itemsize):
    # VMEM blocks pad the last two dims to (sublane_tile, 128); the sublane
    # tile widens for sub-32-bit dtypes (bf16 -> 16, int8/fp8 -> 32).
    # TODO(synk): for bf16/fp8 inputs, fold more rows onto the sublane axis
    # (or bitcast adjacent columns to uint32) to avoid the extra 2-4x
    # sublane padding; f32 (the common case here) is already full-width.
    sub = 8 * max(1, 4 // itemsize)
    s = list(shape)
    s[-1] = -(-s[-1] // 128) * 128
    s[-2] = -(-s[-2] // sub) * sub
    n = 1
    for v in s:
        n *= v
    return n * itemsize


# ---------------------------------------------------------------------------
# Fast-path compile probe (cached per configuration)
# ---------------------------------------------------------------------------
_FAST_PATH_OK = {}


def _probe_compiles(fn, arg_struct, key):
    ok = _FAST_PATH_OK.get(key)
    if ok is None:
        try:
            jax.jit(fn).lower(arg_struct).compile()
            ok = True
        except Exception:
            ok = False
        _FAST_PATH_OK[key] = ok
    return ok


# ---------------------------------------------------------------------------
# Wrapper
# ---------------------------------------------------------------------------
def unpatchify(x, input_size, patch_size, stride):
    assert patch_size == stride, "Patch size and stride should be equal"
    assert input_size % patch_size == 0, "input_size must be divisible by patch_size"
    B, L, D = x.shape
    p = patch_size
    n_h = input_size // p
    n_w = n_h                                    # module assumes square images
    assert D == p * p, "token dim must be patch_size**2"
    assert L % (n_h * n_w) == 0, "L must be divisible by n_h*n_w"
    C = L // (n_h * n_w)
    H = W = input_size                           # W == n_w * p
    BC = B * C
    itemsize = jnp.dtype(x.dtype).itemsize

    # Contiguous (metadata-only) relayout outside the kernel.
    x4 = x.reshape(BC, n_h, n_w, D)
    x_struct = jax.ShapeDtypeStruct(x4.shape, x4.dtype)

    # Generation-aware VMEM sizing.
    vmem_cap = _vmem_capacity_bytes()
    vmem_limit = int(vmem_cap * 0.85)
    block_budget = vmem_cap // 2                 # in+out blocks, double-buffered

    # ------------------ lane-dense path (preferred) ------------------
    if W % 128 == 0:
        in_plane = _padded_block_bytes((1, n_h, n_w, D), itemsize)
        out_plane = _padded_block_bytes((1, n_h, p, W), itemsize)
        max_ct = max(1, block_budget // (2 * (in_plane + out_plane)))
        ct = _pick_ct(BC, max_ct)
        kernel = functools.partial(_unpatchify_kernel_lane_dense, p=p, n_w=n_w)
        fast_fn = pl.pallas_call(
            kernel,
            out_shape=jax.ShapeDtypeStruct((BC, n_h, p, W), x.dtype),
            grid=(BC // ct,),
            in_specs=[pl.BlockSpec((ct, n_h, n_w, D),
                                   lambda g: (g, 0, 0, 0))],
            out_specs=pl.BlockSpec((ct, n_h, p, W),
                                   lambda g: (g, 0, 0, 0)),
            compiler_params=pltpu.CompilerParams(
                dimension_semantics=("parallel",),
                vmem_limit_bytes=vmem_limit),
        )
        key = ("lane_dense", x4.shape, str(x4.dtype), p, n_h, ct)
        if _probe_compiles(fast_fn, x_struct, key):
            out4 = fast_fn(x4)
            return out4.reshape(B, C, H, W)

    # ------------------ fallback path (layout-identical copies) ------------
    # Used for small images (W < 128) or if this Mosaic version cannot lower
    # the sublane->lane merge of the lane-dense kernel.
    # TODO(synk): fully lane-dense regroup for W < 128 (flatten planes to
    # (ct, H*W) and reorder with in-register rolls/selects).
    in_plane = _padded_block_bytes((1, n_h, n_w, D), itemsize)
    out_plane = _padded_block_bytes((1, n_h, p, n_w, p), itemsize)
    max_ct = max(1, block_budget // (2 * (in_plane + out_plane)))
    ct = _pick_ct(BC, max_ct)
    kernel = functools.partial(_unpatchify_kernel_safe, p=p)
    out5 = pl.pallas_call(
        kernel,
        out_shape=jax.ShapeDtypeStruct((BC, n_h, p, n_w, p), x.dtype),
        grid=(BC // ct,),
        in_specs=[pl.BlockSpec((ct, n_h, n_w, D),
                               lambda g: (g, 0, 0, 0))],
        out_specs=pl.BlockSpec((ct, n_h, p, n_w, p),
                               lambda g: (g, 0, 0, 0, 0)),
        compiler_params=pltpu.CompilerParams(
            dimension_semantics=("parallel",),
            vmem_limit_bytes=vmem_limit),
    )(x4)
    return out5.reshape(B, C, H, W)


def unpatchify_reference(x, input_size, patch_size):
    # Pure-JAX reference with the same einops semantics.
    B, L, D = x.shape
    n_h = input_size // patch_size
    C = L // (n_h * n_h)
    t = x.reshape(B, C, n_h, n_h, patch_size, patch_size)
    t = t.transpose(0, 1, 2, 4, 3, 5)
    return t.reshape(B, C, input_size, input_size)


if __name__ == "__main__":
    key = jax.random.PRNGKey(0)
    k1, k2 = jax.random.split(key)

    # Case 1: small configuration implied by the module
    # (input 16x16, patch 4 -> B=2, C=4, L=64, D=16).  W=16 < 128, exercises
    # the robust layout-identical copy path.
    input_size, patch_size, stride = 16, 4, 4
    B, C = 2, 4
    n_h = input_size // patch_size
    L, D = C * n_h * n_h, patch_size * patch_size
    x = jax.random.normal(k1, (B, L, D), dtype=jnp.float32)
    out = jax.block_until_ready(unpatchify(x, input_size, patch_size, stride))
    ref = unpatchify_reference(x, input_size, patch_size)
    assert out.shape == (B, C, input_size, input_size)
    np.testing.assert_allclose(np.asarray(out), np.asarray(ref), rtol=0, atol=0)

    # Case 2: small lane-dense configuration (image width 128 = one lane
    # tile) that exercises the full-width-store kernel (with automatic
    # fallback if the running Mosaic version cannot lower it).
    input_size2, patch_size2 = 128, 16
    B2, C2 = 2, 2
    n_h2 = input_size2 // patch_size2
    L2, D2 = C2 * n_h2 * n_h2, patch_size2 * patch_size2
    x2 = jax.random.normal(k2, (B2, L2, D2), dtype=jnp.float32)
    out2 = jax.block_until_ready(
        unpatchify(x2, input_size2, patch_size2, patch_size2))
    ref2 = unpatchify_reference(x2, input_size2, patch_size2)
    assert out2.shape == (B2, C2, input_size2, input_size2)
    np.testing.assert_allclose(np.asarray(out2), np.asarray(ref2), rtol=0, atol=0)

    print("KERNEL_OK")
</pallas_src>

<mosaic_0001>
module attributes {stable_mosaic.version = 11 : i64} {
  func.func @_unpatchify_kernel_safe(%arg0: i32, %arg1: memref<4x4x4x16xf32, #tpu.memory_space<vmem>>, %arg2: memref<4x4x4x4x4xf32, #tpu.memory_space<vmem>>) attributes {dimension_semantics = [#tpu.dimension_semantics<parallel>], iteration_bounds = array<i64: 2>, scalar_prefetch = 0 : i64, scratch_operands = 0 : i64, tpu.core_type = #tpu.core_type<tc>, window_params = [{transform_indices = @transform_0, window_bounds = array<i64: 4, 4, 4, 16>}, {transform_indices = @transform_1, window_bounds = array<i64: 4, 4, 4, 4, 4>}]} {
    %c0 = arith.constant 0 : index
    %c0_0 = arith.constant 0 : index
    %c0_1 = arith.constant 0 : index
    %c0_2 = arith.constant 0 : index
    %0 = vector.load %arg1[%c0, %c0_0, %c0_1, %c0_2] : memref<4x4x4x16xf32, #tpu.memory_space<vmem>>, vector<4x4x4x4xf32>
    %c0_3 = arith.constant 0 : index
    %c0_4 = arith.constant 0 : index
    %c0_5 = arith.constant 0 : index
    %c0_6 = arith.constant 0 : index
    %c0_7 = arith.constant 0 : index
    %1 = vector.load %arg2[%c0_3, %c0_4, %c0_5, %c0_6, %c0_7] : memref<4x4x4x4x4xf32, #tpu.memory_space<vmem>>, vector<4x4x1x4x4xf32>
    %2 = vector.shape_cast %1 : vector<4x4x1x4x4xf32> to vector<4x4x4x4xf32>
    %3 = vector.shape_cast %0 : vector<4x4x4x4xf32> to vector<4x4x1x4x4xf32>
    tpu.vector_store %arg2[%c0_3, %c0_4, %c0_5, %c0_6, %c0_7], %3 {strides = array<i32>} : memref<4x4x4x4x4xf32, #tpu.memory_space<vmem>>, vector<4x4x1x4x4xf32>,
    %c0_8 = arith.constant 0 : index
    %c0_9 = arith.constant 0 : index
    %c0_10 = arith.constant 0 : index
    %c4 = arith.constant 4 : index
    %4 = vector.load %arg1[%c0_8, %c0_9, %c0_10, %c4] : memref<4x4x4x16xf32, #tpu.memory_space<vmem>>, vector<4x4x4x4xf32>
    %c0_11 = arith.constant 0 : index
    %c0_12 = arith.constant 0 : index
    %c1 = arith.constant 1 : index
    %c0_13 = arith.constant 0 : index
    %c0_14 = arith.constant 0 : index
    %5 = vector.load %arg2[%c0_11, %c0_12, %c1, %c0_13, %c0_14] : memref<4x4x4x4x4xf32, #tpu.memory_space<vmem>>, vector<4x4x1x4x4xf32>
    %6 = vector.shape_cast %5 : vector<4x4x1x4x4xf32> to vector<4x4x4x4xf32>
    %7 = vector.shape_cast %4 : vector<4x4x4x4xf32> to vector<4x4x1x4x4xf32>
    tpu.vector_store %arg2[%c0_11, %c0_12, %c1, %c0_13, %c0_14], %7 {strides = array<i32>} : memref<4x4x4x4x4xf32, #tpu.memory_space<vmem>>, vector<4x4x1x4x4xf32>,
    %c0_15 = arith.constant 0 : index
    %c0_16 = arith.constant 0 : index
    %c0_17 = arith.constant 0 : index
    %c8 = arith.constant 8 : index
    %8 = vector.load %arg1[%c0_15, %c0_16, %c0_17, %c8] : memref<4x4x4x16xf32, #tpu.memory_space<vmem>>, vector<4x4x4x4xf32>
    %c0_18 = arith.constant 0 : index
    %c0_19 = arith.constant 0 : index
    %c2 = arith.constant 2 : index
    %c0_20 = arith.constant 0 : index
    %c0_21 = arith.constant 0 : index
    %9 = vector.load %arg2[%c0_18, %c0_19, %c2, %c0_20, %c0_21] : memref<4x4x4x4x4xf32, #tpu.memory_space<vmem>>, vector<4x4x1x4x4xf32>
    %10 = vector.shape_cast %9 : vector<4x4x1x4x4xf32> to vector<4x4x4x4xf32>
    %11 = vector.shape_cast %8 : vector<4x4x4x4xf32> to vector<4x4x1x4x4xf32>
    tpu.vector_store %arg2[%c0_18, %c0_19, %c2, %c0_20, %c0_21], %11 {strides = array<i32>} : memref<4x4x4x4x4xf32, #tpu.memory_space<vmem>>, vector<4x4x1x4x4xf32>,
    %c0_22 = arith.constant 0 : index
    %c0_23 = arith.constant 0 : index
    %c0_24 = arith.constant 0 : index
    %c12 = arith.constant 12 : index
    %12 = vector.load %arg1[%c0_22, %c0_23, %c0_24, %c12] : memref<4x4x4x16xf32, #tpu.memory_space<vmem>>, vector<4x4x4x4xf32>
    %c0_25 = arith.constant 0 : index
    %c0_26 = arith.constant 0 : index
    %c3 = arith.constant 3 : index
    %c0_27 = arith.constant 0 : index
    %c0_28 = arith.constant 0 : index
    %13 = vector.load %arg2[%c0_25, %c0_26, %c3, %c0_27, %c0_28] : memref<4x4x4x4x4xf32, #tpu.memory_space<vmem>>, vector<4x4x1x4x4xf32>
    %14 = vector.shape_cast %13 : vector<4x4x1x4x4xf32> to vector<4x4x4x4xf32>
    %15 = vector.shape_cast %12 : vector<4x4x4x4xf32> to vector<4x4x1x4x4xf32>
    tpu.vector_store %arg2[%c0_25, %c0_26, %c3, %c0_27, %c0_28], %15 {strides = array<i32>} : memref<4x4x4x4x4xf32, #tpu.memory_space<vmem>>, vector<4x4x1x4x4xf32>,
    return
  }
  func.func @transform_0(%arg0: i32) -> (i32, i32, i32, i32) {
    %c0_i32 = arith.constant 0 : i32
    %c0_i32_0 = arith.constant 0 : i32
    %c0_i32_1 = arith.constant 0 : i32
    %c0_i32_2 = arith.constant 0 : i32
    return %arg0, %c0_i32, %c0_i32_0, %c0_i32_1 : i32, i32, i32, i32
  }
  func.func @transform_1(%arg0: i32) -> (i32, i32, i32, i32, i32) {
    %c0_i32 = arith.constant 0 : i32
    %c0_i32_0 = arith.constant 0 : i32
    %c0_i32_1 = arith.constant 0 : i32
    %c0_i32_2 = arith.constant 0 : i32
    %c0_i32_3 = arith.constant 0 : i32
    return %arg0, %c0_i32, %c0_i32_0, %c0_i32_1, %c0_i32_2 : i32, i32, i32, i32, i32
  }
}

</mosaic_0001>

<llo_original>
// kernel: tpu_custom_call.1
$region0: #{tpu_custom_call.1}
  #allocation0 [shape = 'u32[]', space=smem, size = 0x4, offset = 0x4, fixed_abs, tag = 'smem constant byte address 0x4 - core index']
  #allocation1 [shape = 'u32[144,128]{1,0:T(1,128)}', space=vmem, size = 0x12000, scoped, tag = 'internal scratch']
  %s0 = inlined_call_operand.hbm [shape: f32[8,4,4,16], index: 0, kind: input, shape index: {}]
  %s1 = inlined_call_operand.vmem [shape: f32[8,4,4,4,4], index: 1, kind: output, shape index: {}]
  %s2 = sld [smem:[#allocation0]]
  $region41: #{tpu_custom_call.1} parent=0
    _
  %s4 = ssub.s32 1, %s2
  %s5 = scalar_select 0, %s4, %s2
  $region1: #{tpu_custom_call.1} parent=0
    #allocation2 [shape = 'u8[65536]{0}', space=vmem, size = 0x10000, scoped, tag = 'input window, operand 0']
    #allocation3 [shape = 's32[2]{0}', space=sflag, size = 0x8, scoped, tag = 'scoped memory for tpu_custom_call.1']
    %6 = vsyncpa [#allocation3], 0
    %s7 = scalar_lea.sflag [#allocation3], 1
    %8 = vsyncpa %s7, 0
    loop: start=0, step=1, limit=4
    $region2: #{tpu_custom_call.1} parent=1 // loop_pre_header
      _
    $region3: #{tpu_custom_call.1} parent=1 // loop_header
      %s10 = sphi 0, %s14
      %p11 = scmp.ge.s32.totalorder %s10, 4
      %s20 = sphi 0, %s22
      %s23 = sphi 0, %s20
      %s24 = sphi 0, %s23
      %s40 = sphi 0, %s24
      %s46 = sphi 0, %s48
      %s49 = sphi 0, %s46
      %s50 = sphi 0, %s49
      %s66 = sphi 0, %s50
    $region4: #{tpu_custom_call.1} parent=1 // loop_header_branch
      %13 = sbr.rel (%p11) target = $region8
    $region5: #{tpu_custom_call.1} parent=1 // loop_body
      %s15 = ssub.s32 %s10, 1
      %s16 = ssub.s32 %s10, 2
      %s17 = sadd.s32 %s10, 1
      %s18 = ssub.s32 %s10, %s17
      %p19 = scmp.eq.s32.totalorder %s18, 0
      %s21 = sadd.s32 %s20, 1
      %s22 = scalar_select %p19, %s20, %s21
      %p25 = pneg %p19
      %p26 = scmp.eq.s32.totalorder %s10, 1
      %p27 = por %p25, %p26
      %p28 = scmp.ne.s32.totalorder %s20, %s23
      %p29 = scmp.eq.s32.totalorder %s10, 0
      %p30 = por %p28, %p29
      %p31 = scmp.ne.s32.totalorder %s20, %s23
      %p32 = scmp.eq.s32.totalorder %s15, 1
      %p33 = por %p31, %p32
      %p34 = scmp.ne.s32.totalorder %s23, %s24
      %p35 = scmp.eq.s32.totalorder %s15, 0
      %p36 = por %p34, %p35
      %p37 = scmp.ne.s32.totalorder %s23, %s24
      %p38 = scmp.eq.s32.totalorder %s16, 1
      %p39 = por %p37, %p38
      %p41 = scmp.ne.s32.totalorder %s24, %s40
      %p42 = scmp.eq.s32.totalorder %s16, 0
      %p43 = por %p41, %p42
      %s44 = ssub.s32 %s10, %s17
      %p45 = scmp.eq.s32.totalorder %s44, 0
      %s47 = sadd.s32 %s46, 1
      %s48 = scalar_select %p45, %s46, %s47
      %p51 = pneg %p45
      %p52 = scmp.eq.s32.totalorder %s10, 1
      %p53 = por %p51, %p52
      %p54 = scmp.ne.s32.totalorder %s46, %s49
      %p55 = scmp.eq.s32.totalorder %s10, 0
      %p56 = por %p54, %p55
      %p57 = scmp.ne.s32.totalorder %s46, %s49
      %p58 = scmp.eq.s32.totalorder %s15, 1
      %p59 = por %p57, %p58
      %p60 = scmp.ne.s32.totalorder %s49, %s50
      %p61 = scmp.eq.s32.totalorder %s15, 0
      %p62 = por %p60, %p61
      %p63 = scmp.ne.s32.totalorder %s49, %s50
      %p64 = scmp.eq.s32.totalorder %s16, 1
      %p65 = por %p63, %p64
      %p67 = scmp.ne.s32.totalorder %s50, %s66
      %p68 = scmp.eq.s32.totalorder %s16, 0
      %p69 = por %p67, %p68
      %p70 = scmp.le.s32.totalorder 1, %s10
      %p71 = scmp.lt.s32.totalorder %s10, 3
      %p72 = pnand %p70, %p71
      %p73 = pneg %p72
      // Predicated region
      $region9: #{tpu_custom_call.1} parent=5 // pred_check
        _
      $region10: #{tpu_custom_call.1} parent=5 // pred_check_branch
        %75 = sbr.rel (%p72) target = $region12
      $region11: #{tpu_custom_call.1} parent=5 // pred_region
        %s76 = ssub.s32 %s10, 1
      $region12: #{tpu_custom_call.1} parent=5 // pred_fallthru
        _
      %p77 = scmp.lt.s32.totalorder %s10, 2
      // Predicated region
      $region13: #{tpu_custom_call.1} parent=5 // pred_check
        %p78 = pneg %p77
      $region14: #{tpu_custom_call.1} parent=5 // pred_check_branch
        %80 = sbr.rel (%p78) target = $region16
      $region15: #{tpu_custom_call.1} parent=5 // pred_region
        // Predicated region
        $region17: #{tpu_custom_call.1} parent=15 // pred_check
          %p81 = pneg %p30
        $region18: #{tpu_custom_call.1} parent=15 // pred_check_branch
          %83 = sbr.rel (%p81) target = $region20
        $region19: #{tpu_custom_call.1} parent=15 // pred_region
          %s84 = sand.u32 %s20, 1
          %s85 = scalar_lea.sflag [#allocation3], %s84
          %s86 = sand.u32 %s20, 1
          %s87 = smul.addr %s86, 64
          %s88 = scalar_lea.vmem [#allocation2], %s87
          %s89 = smul.u32 4, %s10
          %s91 = ssub.s32 1024, 1024
          %92 = vsyncadd %s85, %s91
          %s93 = smul.addr %s89, 4
          %s94 = smul.addr %s93, 64
          %s95 = scalar_lea.hbm %s0, %s94
          %s96 = sshll.u32 %s88, 4
          %s97 = int_to_ptr.vmem [resolvable:$true] %s96
          %102 = dma.hbm_to_vmem [thread:$0]  %s95, 1024, %s97, %s85, 64, 64, 4
        $region20: #{tpu_custom_call.1} parent=15 // pred_fallthru
          _
      $region16: #{tpu_custom_call.1} parent=5 // pred_fallthru
        _
      %p103 = scmp.le.s32.totalorder 1, %s10
      %p104 = scmp.lt.s32.totalorder %s10, 3
      %p105 = pnand %p103, %p104
      %p106 = pneg %p105
      // Predicated region
      $region21: #{tpu_custom_call.1} parent=5 // pred_check
        _
      $region22: #{tpu_custom_call.1} parent=5 // pred_check_branch
        %108 = sbr.rel (%p105) target = $region24
      $region23: #{tpu_custom_call.1} parent=5 // pred_region
        %s109 = ssub.s32 %s10, 1
        %s110 = sand.u32 %s23, 1
        %s111 = scalar_lea.sflag [#allocation3], %s110
        %s112 = sand.u32 %s23, 1
        %s113 = smul.addr %s112, 64
        %s114 = scalar_lea.vmem [#allocation2], %s113
        // Predicated region
        $region25: #{tpu_custom_call.1} parent=23 // pred_check
          %p115 = pneg %p36
        $region26: #{tpu_custom_call.1} parent=23 // pred_check_branch
          %117 = sbr.rel (%p115) target = $region28
        $region27: #{tpu_custom_call.1} parent=23 // pred_region
          %118 = dma.done %s111, 1024
        $region28: #{tpu_custom_call.1} parent=23 // pred_fallthru
          _
        %s119 = sand.u32 %s23, 1
        %s120 = scalar_lea.sflag [#allocation3], %s119
        %s121 = sand.u32 %s23, 1
        %s122 = smul.addr %s121, 64
        %s123 = scalar_lea.vmem [#allocation2], %s122
        %p124 = pneg %p36
        %p125 = pneg %p33
        %p126 = pneg %p62
        %p127 = pneg %p59
        %s128 = smul.u32 4, %s15
        %p129 = scmp.lt.s32.totalorder %s128, 7
        %s130 = scalar_select %p129, %s128, 7
        %s131 = smul.addr %s130, 16
        %s132 = smul.addr %s131, 4
        %s133 = scalar_lea.vmem %s1, %s132
        %s134 = smul.u32 4, %s15
        %s135 = smul.u32 4, %s15
        %p136 = scmp.lt.s32.totalorder %s135, 7
        %s137 = scalar_select %p136, %s135, 7
        %s138 = smul.addr %s137, 16
        %s139 = smul.addr %s138, 4
        %s140 = scalar_lea.vmem %s1, %s139
        %s141 = smul.u32 4, %s15
        %v142 = vld [vmem:[%s114] sm:$0xf]
        %v143 = vld [vmem:[%s114 + $0x4] sm:$0xf]
        %v144 = vld [vmem:[%s114 + $0x8] sm:$0xf]
        %v145 = vld [vmem:[%s114 + $0xc] sm:$0xf]
        %v146 = vld [vmem:[%s114 + $0x10] sm:$0xf]
        %v147 = vld [vmem:[%s114 + $0x14] sm:$0xf]
        %v148 = vld [vmem:[%s114 + $0x18] sm:$0xf]
        %v149 = vld [vmem:[%s114 + $0x1c] sm:$0xf]
        %v150 = vld [vmem:[%s114 + $0x20] sm:$0xf]
        %v151 = vld [vmem:[%s114 + $0x24] sm:$0xf]
        %v152 = vld [vmem:[%s114 + $0x28] sm:$0xf]
        %v153 = vld [vmem:[%s114 + $0x2c] sm:$0xf]
        %v154 = vld [vmem:[%s114 + $0x30] sm:$0xf]
        %v155 = vld [vmem:[%s114 + $0x34] sm:$0xf]
        %v156 = vld [vmem:[%s114 + $0x38] sm:$0xf]
        %v157 = vld [vmem:[%s114 + $0x3c] sm:$0xf]
        %vm158 = vcmask 27648
        %159 = vst.msk [vmem:[%s140] sm:$0xf] %vm158, %v142
        %160 = vst.msk [vmem:[%s140 + $0x10] sm:$0xf] %vm158, %v143
        %161 = vst.msk [vmem:[%s140 + $0x20] sm:$0xf] %vm158, %v144
        %162 = vst.msk [vmem:[%s140 + $0x30] sm:$0xf] %vm158, %v145
        %163 = vst.msk [vmem:[%s140 + $0x40] sm:$0xf] %vm158, %v146
        %164 = vst.msk [vmem:[%s140 + $0x50] sm:$0xf] %vm158, %v147
        %165 = vst.msk [vmem:[%s140 + $0x60] sm:$0xf] %vm158, %v148
        %166 = vst.msk [vmem:[%s140 + $0x70] sm:$0xf] %vm158, %v149
        %167 = vst.msk [vmem:[%s140 + $0x80] sm:$0xf] %vm158, %v150
        %168 = vst.msk [vmem:[%s140 + $0x90] sm:$0xf] %vm158, %v151
        %169 = vst.msk [vmem:[%s140 + $0xa0] sm:$0xf] %vm158, %v152
        %170 = vst.msk [vmem:[%s140 + $0xb0] sm:$0xf] %vm158, %v153
        %171 = vst.msk [vmem:[%s140 + $0xc0] sm:$0xf] %vm158, %v154
        %172 = vst.msk [vmem:[%s140 + $0xd0] sm:$0xf] %vm158, %v155
        %173 = vst.msk [vmem:[%s140 + $0xe0] sm:$0xf] %vm158, %v156
        %174 = vst.msk [vmem:[%s140 + $0xf0] sm:$0xf] %vm158, %v157
        %v175 = vld [vmem:[%s114] sm:$0xf]
        %v176 = vld [vmem:[%s114 + $0x4] sm:$0xf]
        %v177 = vld [vmem:[%s114 + $0x8] sm:$0xf]
        %v178 = vld [vmem:[%s114 + $0xc] sm:$0xf]
        %v179 = vld [vmem:[%s114 + $0x10] sm:$0xf]
        %v180 = vld [vmem:[%s114 + $0x14] sm:$0xf]
        %v181 = vld [vmem:[%s114 + $0x18] sm:$0xf]
        %v182 = vld [vmem:[%s114 + $0x1c] sm:$0xf]
        %v183 = vld [vmem:[%s114 + $0x20] sm:$0xf]
        %v184 = vld [vmem:[%s114 + $0x24] sm:$0xf]
        %v185 = vld [vmem:[%s114 + $0x28] sm:$0xf]
        %v186 = vld [vmem:[%s114 + $0x2c] sm:$0xf]
        %v187 = vld [vmem:[%s114 + $0x30] sm:$0xf]
        %v188 = vld [vmem:[%s114 + $0x34] sm:$0xf]
        %v189 = vld [vmem:[%s114 + $0x38] sm:$0xf]
        %v190 = vld [vmem:[%s114 + $0x3c] sm:$0xf]
        %207 = vrot.lane.b32.xlu0 %v175, 124
        %v208 = vpop.permute.xlu0 %207
        %209 = vrot.lane.b32.xlu0 %v176, 124
        %v210 = vpop.permute.xlu0 %209
        %211 = vrot.lane.b32.xlu0 %v177, 124
        %v212 = vpop.permute.xlu0 %211
        %213 = vrot.lane.b32.xlu0 %v178, 124
        %v214 = vpop.permute.xlu0 %213
        %215 = vrot.lane.b32.xlu0 %v179, 124
        %v216 = vpop.permute.xlu0 %215
        %217 = vrot.lane.b32.xlu0 %v180, 124
        %v218 = vpop.permute.xlu0 %217
        %219 = vrot.lane.b32.xlu0 %v181, 124
        %v220 = vpop.permute.xlu0 %219
        %221 = vrot.lane.b32.xlu0 %v182, 124
        %v222 = vpop.permute.xlu0 %221
        %223 = vrot.lane.b32.xlu0 %v183, 124
        %v224 = vpop.permute.xlu0 %223
        %225 = vrot.lane.b32.xlu0 %v184, 124
        %v226 = vpop.permute.xlu0 %225
        %227 = vrot.lane.b32.xlu0 %v185, 124
        %v228 = vpop.permute.xlu0 %227
        %229 = vrot.lane.b32.xlu0 %v186, 124
        %v230 = vpop.permute.xlu0 %229
        %231 = vrot.lane.b32.xlu0 %v187, 124
        %v232 = vpop.permute.xlu0 %231
        %233 = vrot.lane.b32.xlu0 %v188, 124
        %v234 = vpop.permute.xlu0 %233
        %235 = vrot.lane.b32.xlu0 %v189, 124
        %v236 = vpop.permute.xlu0 %235
        %237 = vrot.lane.b32.xlu0 %v190, 124
        %v238 = vpop.permute.xlu0 %237
        %s255 = scalar_lea.vmem %s140, 4
        %256 = vst.msk [vmem:[%s255] sm:$0xf] %vm158, %v208
        %257 = vst.msk [vmem:[%s255 + $0x10] sm:$0xf] %vm158, %v210
        %258 = vst.msk [vmem:[%s255 + $0x20] sm:$0xf] %vm158, %v212
        %259 = vst.msk [vmem:[%s255 + $0x30] sm:$0xf] %vm158, %v214
        %260 = vst.msk [vmem:[%s255 + $0x40] sm:$0xf] %vm158, %v216
        %261 = vst.msk [vmem:[%s255 + $0x50] sm:$0xf] %vm158, %v218
        %262 = vst.msk [vmem:[%s255 + $0x60] sm:$0xf] %vm158, %v220
        %263 = vst.msk [vmem:[%s255 + $0x70] sm:$0xf] %vm158, %v222
        %264 = vst.msk [vmem:[%s255 + $0x80] sm:$0xf] %vm158, %v224
        %265 = vst.msk [vmem:[%s255 + $0x90] sm:$0xf] %vm158, %v226
        %266 = vst.msk [vmem:[%s255 + $0xa0] sm:$0xf] %vm158, %v228
        %267 = vst.msk [vmem:[%s255 + $0xb0] sm:$0xf] %vm158, %v230
        %268 = vst.msk [vmem:[%s255 + $0xc0] sm:$0xf] %vm158, %v232
        %269 = vst.msk [vmem:[%s255 + $0xd0] sm:$0xf] %vm158, %v234
        %270 = vst.msk [vmem:[%s255 + $0xe0] sm:$0xf] %vm158, %v236
        %271 = vst.msk [vmem:[%s255 + $0xf0] sm:$0xf] %vm158, %v238
        %v272 = vld [vmem:[%s114] sm:$0xf]
        %v273 = vld [vmem:[%s114 + $0x4] sm:$0xf]
        %v274 = vld [vmem:[%s114 + $0x8] sm:$0xf]
        %v275 = vld [vmem:[%s114 + $0xc] sm:$0xf]
        %v276 = vld [vmem:[%s114 + $0x10] sm:$0xf]
        %v277 = vld [vmem:[%s114 + $0x14] sm:$0xf]
        %v278 = vld [vmem:[%s114 + $0x18] sm:$0xf]
        %v279 = vld [vmem:[%s114 + $0x1c] sm:$0xf]
        %v280 = vld [vmem:[%s114 + $0x20] sm:$0xf]
        %v281 = vld [vmem:[%s114 + $0x24] sm:$0xf]
        %v282 = vld [vmem:[%s114 + $0x28] sm:$0xf]
        %v283 = vld [vmem:[%s114 + $0x2c] sm:$0xf]
        %v284 = vld [vmem:[%s114 + $0x30] sm:$0xf]
        %v285 = vld [vmem:[%s114 + $0x34] sm:$0xf]
        %v286 = vld [vmem:[%s114 + $0x38] sm:$0xf]
        %v287 = vld [vmem:[%s114 + $0x3c] sm:$0xf]
        %304 = vrot.lane.b32.xlu0 %v272, 120
        %v305 = vpop.permute.xlu0 %304
        %306 = vrot.lane.b32.xlu0 %v273, 120
        %v307 = vpop.permute.xlu0 %306
        %308 = vrot.lane.b32.xlu0 %v274, 120
        %v309 = vpop.permute.xlu0 %308
        %310 = vrot.lane.b32.xlu0 %v275, 120
        %v311 = vpop.permute.xlu0 %310
        %312 = vrot.lane.b32.xlu0 %v276, 120
        %v313 = vpop.permute.xlu0 %312
        %314 = vrot.lane.b32.xlu0 %v277, 120
        %v315 = vpop.permute.xlu0 %314
        %316 = vrot.lane.b32.xlu0 %v278, 120
        %v317 = vpop.permute.xlu0 %316
        %318 = vrot.lane.b32.xlu0 %v279, 120
        %v319 = vpop.permute.xlu0 %318
        %320 = vrot.lane.b32.xlu0 %v280, 120
        %v321 = vpop.permute.xlu0 %320
        %322 = vrot.lane.b32.xlu0 %v281, 120
        %v323 = vpop.permute.xlu0 %322
        %324 = vrot.lane.b32.xlu0 %v282, 120
        %v325 = vpop.permute.xlu0 %324
        %326 = vrot.lane.b32.xlu0 %v283, 120
        %v327 = vpop.permute.xlu0 %326
        %328 = vrot.lane.b32.xlu0 %v284, 120
        %v329 = vpop.permute.xlu0 %328
        %330 = vrot.lane.b32.xlu0 %v285, 120
        %v331 = vpop.permute.xlu0 %330
        %332 = vrot.lane.b32.xlu0 %v286, 120
        %v333 = vpop.permute.xlu0 %332
        %334 = vrot.lane.b32.xlu0 %v287, 120
        %v335 = vpop.permute.xlu0 %334
        %s352 = scalar_lea.vmem %s140, 8
        %353 = vst.msk [vmem:[%s352] sm:$0xf] %vm158, %v305
        %354 = vst.msk [vmem:[%s352 + $0x10] sm:$0xf] %vm158, %v307
        %355 = vst.msk [vmem:[%s352 + $0x20] sm:$0xf] %vm158, %v309
        %356 = vst.msk [vmem:[%s352 + $0x30] sm:$0xf] %vm158, %v311
        %357 = vst.msk [vmem:[%s352 + $0x40] sm:$0xf] %vm158, %v313
        %358 = vst.msk [vmem:[%s352 + $0x50] sm:$0xf] %vm158, %v315
        %359 = vst.msk [vmem:[%s352 + $0x60] sm:$0xf] %vm158, %v317
        %360 = vst.msk [vmem:[%s352 + $0x70] sm:$0xf] %vm158, %v319
        %361 = vst.msk [vmem:[%s352 + $0x80] sm:$0xf] %vm158, %v321
        %362 = vst.msk [vmem:[%s352 + $0x90] sm:$0xf] %vm158, %v323
        %363 = vst.msk [vmem:[%s352 + $0xa0] sm:$0xf] %vm158, %v325
        %364 = vst.msk [vmem:[%s352 + $0xb0] sm:$0xf] %vm158, %v327
        %365 = vst.msk [vmem:[%s352 + $0xc0] sm:$0xf] %vm158, %v329
        %366 = vst.msk [vmem:[%s352 + $0xd0] sm:$0xf] %vm158, %v331
        %367 = vst.msk [vmem:[%s352 + $0xe0] sm:$0xf] %vm158, %v333
        %368 = vst.msk [vmem:[%s352 + $0xf0] sm:$0xf] %vm158, %v335
        %v369 = vld [vmem:[%s114] sm:$0xf]
        %v370 = vld [vmem:[%s114 + $0x4] sm:$0xf]
        %v371 = vld [vmem:[%s114 + $0x8] sm:$0xf]
        %v372 = vld [vmem:[%s114 + $0xc] sm:$0xf]
        %v373 = vld [vmem:[%s114 + $0x10] sm:$0xf]
        %v374 = vld [vmem:[%s114 + $0x14] sm:$0xf]
        %v375 = vld [vmem:[%s114 + $0x18] sm:$0xf]
        %v376 = vld [vmem:[%s114 + $0x1c] sm:$0xf]
        %v377 = vld [vmem:[%s114 + $0x20] sm:$0xf]
        %v378 = vld [vmem:[%s114 + $0x24] sm:$0xf]
        %v379 = vld [vmem:[%s114 + $0x28] sm:$0xf]
        %v380 = vld [vmem:[%s114 + $0x2c] sm:$0xf]
        %v381 = vld [vmem:[%s114 + $0x30] sm:$0xf]
        %v382 = vld [vmem:[%s114 + $0x34] sm:$0xf]
        %v383 = vld [vmem:[%s114 + $0x38] sm:$0xf]
        %v384 = vld [vmem:[%s114 + $0x3c] sm:$0xf]
        %401 = vrot.lane.b32.xlu0 %v369, 116
        %v402 = vpop.permute.xlu0 %401
        %403 = vrot.lane.b32.xlu0 %v370, 116
        %v404 = vpop.permute.xlu0 %403
        %405 = vrot.lane.b32.xlu0 %v371, 116
        %v406 = vpop.permute.xlu0 %405
        %407 = vrot.lane.b32.xlu0 %v372, 116
        %v408 = vpop.permute.xlu0 %407
        %409 = vrot.lane.b32.xlu0 %v373, 116
        %v410 = vpop.permute.xlu0 %409
        %411 = vrot.lane.b32.xlu0 %v374, 116
        %v412 = vpop.permute.xlu0 %411
        %413 = vrot.lane.b32.xlu0 %v375, 116
        %v414 = vpop.permute.xlu0 %413
        %415 = vrot.lane.b32.xlu0 %v376, 116
        %v416 = vpop.permute.xlu0 %415
        %417 = vrot.lane.b32.xlu0 %v377, 116
        %v418 = vpop.permute.xlu0 %417
        %419 = vrot.lane.b32.xlu0 %v378, 116
        %v420 = vpop.permute.xlu0 %419
        %421 = vrot.lane.b32.xlu0 %v379, 116
        %v422 = vpop.permute.xlu0 %421
        %423 = vrot.lane.b32.xlu0 %v380, 116
        %v424 = vpop.permute.xlu0 %423
        %425 = vrot.lane.b32.xlu0 %v381, 116
        %v426 = vpop.permute.xlu0 %425
        %427 = vrot.lane.b32.xlu0 %v382, 116
        %v428 = vpop.permute.xlu0 %427
        %429 = vrot.lane.b32.xlu0 %v383, 116
        %v430 = vpop.permute.xlu0 %429
        %431 = vrot.lane.b32.xlu0 %v384, 116
        %v432 = vpop.permute.xlu0 %431
        %s449 = scalar_lea.vmem %s140, 12
        %450 = vst.msk [vmem:[%s449] sm:$0xf] %vm158, %v402
        %451 = vst.msk [vmem:[%s449 + $0x10] sm:$0xf] %vm158, %v404
        %452 = vst.msk [vmem:[%s449 + $0x20] sm:$0xf] %vm158, %v406
        %453 = vst.msk [vmem:[%s449 + $0x30] sm:$0xf] %vm158, %v408
        %454 = vst.msk [vmem:[%s449 + $0x40] sm:$0xf] %vm158, %v410
        %455 = vst.msk [vmem:[%s449 + $0x50] sm:$0xf] %vm158, %v412
        %456 = vst.msk [vmem:[%s449 + $0x60] sm:$0xf] %vm158, %v414
        %457 = vst.msk [vmem:[%s449 + $0x70] sm:$0xf] %vm158, %v416
        %458 = vst.msk [vmem:[%s449 + $0x80] sm:$0xf] %vm158, %v418
        %459 = vst.msk [vmem:[%s449 + $0x90] sm:$0xf] %vm158, %v420
        %460 = vst.msk [vmem:[%s449 + $0xa0] sm:$0xf] %vm158, %v422
        %461 = vst.msk [vmem:[%s449 + $0xb0] sm:$0xf] %vm158, %v424
        %462 = vst.msk [vmem:[%s449 + $0xc0] sm:$0xf] %vm158, %v426
        %463 = vst.msk [vmem:[%s449 + $0xd0] sm:$0xf] %vm158, %v428
        %464 = vst.msk [vmem:[%s449 + $0xe0] sm:$0xf] %vm158, %v430
        %465 = vst.msk [vmem:[%s449 + $0xf0] sm:$0xf] %vm158, %v432
        %s466 = smul.u32 4, %s15
        %p467 = scmp.lt.s32.totalorder %s466, 7
        %s468 = scalar_select %p467, %s466, 7
        %s469 = smul.addr %s468, 16
        %s470 = smul.addr %s469, 4
        %s471 = scalar_lea.vmem %s1, %s470
        // Predicated region
        $region29: #{tpu_custom_call.1} parent=23 // pred_check
          %p472 = pneg %p59
        $region30: #{tpu_custom_call.1} parent=23 // pred_check_branch
          %474 = sbr.rel (%p472) target = $region32
        $region31: #{tpu_custom_call.1} parent=23 // pred_region
          %s475 = smul.u32 4, %s15
        $region32: #{tpu_custom_call.1} parent=23 // pred_fallthru
          _
      $region24: #{tpu_custom_call.1} parent=5 // pred_fallthru
        _
      %p476 = scmp.le.s32.totalorder 2, %s10
      // Predicated region
      $region33: #{tpu_custom_call.1} parent=5 // pred_check
        %p477 = pneg %p476
      $region34: #{tpu_custom_call.1} parent=5 // pred_check_branch
        %479 = sbr.rel (%p477) target = $region36
      $region35: #{tpu_custom_call.1} parent=5 // pred_region
        %s480 = ssub.s32 %s10, 2
        // Predicated region
        $region37: #{tpu_custom_call.1} parent=35 // pred_check
          %p481 = pneg %p65
        $region38: #{tpu_custom_call.1} parent=35 // pred_check_branch
          %483 = sbr.rel (%p481) target = $region40
        $region39: #{tpu_custom_call.1} parent=35 // pred_region
          %s484 = smul.u32 4, %s16
          %p485 = scmp.lt.s32.totalorder %s484, 7
          %s486 = scalar_select %p485, %s484, 7
          %s487 = smul.addr %s486, 16
          %s488 = smul.addr %s487, 4
          %s489 = scalar_lea.vmem %s1, %s488
        $region40: #{tpu_custom_call.1} parent=35 // pred_fallthru
          _
      $region36: #{tpu_custom_call.1} parent=5 // pred_fallthru
        _
    $region6: #{tpu_custom_call.1} parent=1 // loop_footer
      %s14 = sadd.s32 1, %s10
    $region7: #{tpu_custom_call.1} parent=1 // loop_footer_branch
      %9 = sbr.rel target = $region3
    $region8: #{tpu_custom_call.1} parent=1 // loop_exit
      _
    %490 = vsyncpa [#allocation3], 1
    %s491 = scalar_lea.sflag [#allocation3], 1
    %492 = vsyncpa %s491, 1

</llo_original>
